<compile_context>
chip_gen: v6e
topology: v6e:2x2x1
jax: 0.10.0
libtpu: 0.0.40
codegen_flags: <defaults>
</compile_context>

<pallas_src>
import functools

import jax
import jax.numpy as jnp
from jax.experimental import pallas as pl
from jax.experimental.pallas import tpu as pltpu


# ----------------------------- Pallas kernel --------------------------------
def _fused_head_kernel(x_ref, proj_ref, w_ref, b_ref, o_ref, *, inv_hw):
    """Fused frozen backbone (GAP + projection) + trainable fc, one output tile.

      x_ref    : [B, C, H*W]  f32   full block, constant index (DMA'd once)
      proj_ref : [C, K]       bf16  frozen projection, constant index
      w_ref    : [K, tn]      bf16  trainable fc weight tile (pre-transposed)
      b_ref    : [1, tn]      f32   bias tile
      o_ref    : [B, tn]      f32   logits tile
    """
    # Global average pool: cross-lane reduce over H*W (XLU slot; MXU idle here).
    xm = jnp.sum(x_ref[...], axis=-1) * inv_hw                        # [B, C] f32
    # Frozen projection: tiny [B,C]@[C,K] dot, bf16 operands, f32 accumulation.
    feat = jnp.dot(xm.astype(proj_ref.dtype), proj_ref[...],
                   preferred_element_type=jnp.float32)                # [B, K] f32
    # Trainable fc tile: bf16 operands, f32 accumulation on the MXU.
    out = jnp.dot(feat.astype(w_ref.dtype), w_ref[...],
                  preferred_element_type=jnp.float32)                 # [B, tn]
    o_ref[...] = (out + b_ref[...]).astype(o_ref.dtype)


# ------------------------------- wrapper -------------------------------------
@functools.partial(jax.jit, static_argnames=("tn",))
def linear_head_forward(x_nchw, proj, w_t, bias, *, tn=None):
    """Full forward: NCHW input -> [B, dim_out] logits, one pallas_call."""
    B, C, H, W = x_nchw.shape
    HW = H * W
    C2, K = proj.shape
    K2, N = w_t.shape
    assert C == C2 and K == K2 and bias.shape == (N,)

    # Free reshape (contiguous): no data movement, no padding copy of x.
    x3d = x_nchw.reshape(B, C, HW)

    # Output tile width: largest lane-dense divisor of N, preferring an even
    # number of grid steps so the "parallel" axis shards across both v7x TCs.
    if tn is None:
        cands = [t for t in (1024, 512, 256, 128) if N % t == 0]
        if cands:
            tn = next((t for t in cands if (N // t) % 2 == 0), cands[0])
        else:
            tn = N  # small/odd head: single full-width (full-dim) block
    assert N % tn == 0, "dim_out must be divisible by the chosen tile width"
    n_j = N // tn

    bias2d = bias.reshape(1, N).astype(jnp.float32)

    # Cost estimate reflects the restructured kernel: the frozen dot is tiny
    # (and recomputed per tile), the fc GEMV dominates; bytes are read-once.
    cost = pl.CostEstimate(
        flops=2 * B * C * K * n_j + 2 * B * K * N,
        transcendentals=0,
        bytes_accessed=(x3d.size * x3d.dtype.itemsize
                        + proj.size * proj.dtype.itemsize
                        + w_t.size * w_t.dtype.itemsize
                        + bias2d.size * bias2d.dtype.itemsize
                        + B * N * 4),
    )

    out = pl.pallas_call(
        functools.partial(_fused_head_kernel, inv_hw=1.0 / float(HW)),
        out_shape=jax.ShapeDtypeStruct((B, N), jnp.float32),
        grid_spec=pltpu.PrefetchScalarGridSpec(
            num_scalar_prefetch=0,
            grid=(n_j,),
            in_specs=[
                # Constant index maps: Pallas DMAs these once and keeps them
                # resident; the fc weight/bias tiles stream per grid step.
                pl.BlockSpec((B, C, HW), lambda j: (0, 0, 0)),  # input (full block)
                pl.BlockSpec((C, K), lambda j: (0, 0)),         # frozen proj (bf16)
                pl.BlockSpec((K, tn), lambda j: (0, j)),        # fc weight tile (bf16)
                pl.BlockSpec((1, tn), lambda j: (0, j)),        # bias tile
            ],
            out_specs=pl.BlockSpec((B, tn), lambda j: (0, j)),
        ),
        compiler_params=pltpu.CompilerParams(
            dimension_semantics=("parallel",),       # shard output tiles (megacore)
            vmem_limit_bytes=32 * 1024 * 1024,       # explicit scoped-VMEM budget
        ),
        cost_estimate=cost,
    )(x3d, proj, w_t, bias2d)

    return out


# --------------------------------- module -----------------------------------
class LinearHeadPallas:
    """LinearHead: frozen backbone (no grad) + trainable fc."""

    def __init__(self, key, c_in, h, w, dim_in=256, dim_out=128):
        k_net, k_fc = jax.random.split(key)

        # TODO(synk): `self.net` is an arbitrary user-supplied frozen module; it
        # is represented here by a deterministic frozen stand-in (global average
        # pool over HxW + frozen linear projection to dim_in).  The GAP runs
        # inside the kernel; the projection is stored un-repeated as [C, dim_in]
        # in bf16.  No gradient flows through it (forward-only), matching
        # `with torch.no_grad()`.
        self.proj = jax.random.normal(
            k_net, (c_in, dim_in), jnp.float32).astype(jnp.bfloat16)  # [C, dim_in]

        # fc: weight ~ N(0, 0.01), bias = 0  (matches the PyTorch init).
        # Stored pre-transposed [dim_in, dim_out] and in bf16 (mem-bound GEMV);
        # accumulation stays f32 inside the kernel.
        w_fc = jax.random.normal(k_fc, (dim_out, dim_in), jnp.float32) * 0.01
        self.w_t = w_fc.T.astype(jnp.bfloat16)                        # [dim_in, dim_out]
        self.bias = jnp.zeros((dim_out,), jnp.float32)

    def __call__(self, x_nchw):
        return linear_head_forward(x_nchw, self.proj, self.w_t, self.bias)


# ---------------------------------- main -------------------------------------
if __name__ == "__main__":
    key = jax.random.PRNGKey(0)
    k_x, k_m = jax.random.split(key)

    B, C, H, W = 2, 4, 16, 16
    dim_in, dim_out = 256, 128

    x = jax.random.normal(k_x, (B, C, H, W), jnp.float32)   # NCHW input
    head = LinearHeadPallas(k_m, c_in=C, h=H, w=W, dim_in=dim_in, dim_out=dim_out)

    out = jax.block_until_ready(head(x))

    # reference check in plain JAX (mirrors the kernel's bf16 cast points)
    xm_ref = jnp.mean(x, axis=(2, 3))                                   # [B, C] f32
    feat_ref = jnp.dot(xm_ref.astype(jnp.bfloat16).astype(jnp.float32),
                       head.proj.astype(jnp.float32))                   # [B, dim_in]
    ref = jnp.dot(feat_ref.astype(jnp.bfloat16).astype(jnp.float32),
                  head.w_t.astype(jnp.float32)) + head.bias             # [B, dim_out]

    assert out.shape == (B, dim_out)
    assert jnp.allclose(out, ref, atol=1e-4, rtol=1e-2), (
        float(jnp.max(jnp.abs(out - ref))))

    print("KERNEL_OK")
</pallas_src>

<mosaic_0001>
module attributes {stable_mosaic.version = 11 : i64} {
  func.func @_fused_head_kernel(%arg0: i32, %arg1: memref<2x4x256xf32, #tpu.memory_space<vmem>>, %arg2: memref<4x256xbf16, #tpu.memory_space<vmem>>, %arg3: memref<256x128xbf16, #tpu.memory_space<vmem>>, %arg4: memref<1x128xf32, #tpu.memory_space<vmem>>, %arg5: memref<2x128xf32, #tpu.memory_space<vmem>>) attributes {dimension_semantics = [#tpu.dimension_semantics<parallel>], iteration_bounds = array<i64: 1>, scalar_prefetch = 0 : i64, scratch_operands = 0 : i64, tpu.core_type = #tpu.core_type<tc>, window_params = [{pipeline_mode = #tpu.pipeline_mode<synchronous>, transform_indices = @transform_0, window_bounds = array<i64: 2, 4, 256>}, {pipeline_mode = #tpu.pipeline_mode<synchronous>, transform_indices = @transform_1, window_bounds = array<i64: 4, 256>}, {transform_indices = @transform_2, window_bounds = array<i64: 256, 128>}, {transform_indices = @transform_3, window_bounds = array<i64: 1, 128>}, {transform_indices = @transform_4, window_bounds = array<i64: 2, 128>}]} {
    %c0 = arith.constant 0 : index
    %c0_0 = arith.constant 0 : index
    %c0_1 = arith.constant 0 : index
    %0 = vector.load %arg1[%c0, %c0_0, %c0_1] : memref<2x4x256xf32, #tpu.memory_space<vmem>>, vector<2x4x256xf32>
    %cst = arith.constant dense<0.000000e+00> : vector<2x4xf32>
    %1 = vector.multi_reduction <add>, %0, %cst [2] : vector<2x4x256xf32> to vector<2x4xf32>
    %cst_2 = arith.constant 3.906250e-03 : f32
    %2 = vector.broadcast %cst_2 : f32 to vector<2x4xf32>
    %3 = arith.mulf %1, %2 : vector<2x4xf32>
    %4 = arith.truncf %3 : vector<2x4xf32> to vector<2x4xbf16>
    %c0_3 = arith.constant 0 : index
    %c0_4 = arith.constant 0 : index
    %5 = vector.load %arg2[%c0_3, %c0_4] : memref<4x256xbf16, #tpu.memory_space<vmem>>, vector<4x256xbf16>
    %cst_5 = arith.constant dense<0.000000e+00> : vector<2x256xf32>
    %6 = tpu.matmul %4, %5, %cst_5 {dimension_numbers = #tpu.dot_dimension_numbers<[1], [0], [0], [1], [0, 0, 1, 1], [], []>} : vector<2x4xbf16>, vector<4x256xbf16>, vector<2x256xf32> -> vector<2x256xf32>
    %7 = arith.truncf %6 : vector<2x256xf32> to vector<2x256xbf16>
    %c0_6 = arith.constant 0 : index
    %c0_7 = arith.constant 0 : index
    %8 = vector.load %arg3[%c0_6, %c0_7] : memref<256x128xbf16, #tpu.memory_space<vmem>>, vector<256x128xbf16>
    %cst_8 = arith.constant dense<0.000000e+00> : vector<2x128xf32>
    %9 = tpu.matmul %7, %8, %cst_8 {dimension_numbers = #tpu.dot_dimension_numbers<[1], [0], [0], [1], [0, 0, 1, 1], [], []>} : vector<2x256xbf16>, vector<256x128xbf16>, vector<2x128xf32> -> vector<2x128xf32>
    %c0_9 = arith.constant 0 : index
    %c0_10 = arith.constant 0 : index
    %10 = vector.load %arg4[%c0_9, %c0_10] : memref<1x128xf32, #tpu.memory_space<vmem>>, vector<1x128xf32>
    %11 = vector.broadcast %10 : vector<1x128xf32> to vector<2x128xf32>
    %12 = arith.addf %9, %11 : vector<2x128xf32>
    %c0_11 = arith.constant 0 : index
    %c0_12 = arith.constant 0 : index
    %13 = vector.load %arg5[%c0_11, %c0_12] : memref<2x128xf32, #tpu.memory_space<vmem>>, vector<2x128xf32>
    tpu.vector_store %arg5[%c0_11, %c0_12], %12 {strides = array<i32>} : memref<2x128xf32, #tpu.memory_space<vmem>>, vector<2x128xf32>,
    return
  }
  func.func @transform_0(%arg0: i32) -> (i32, i32, i32) {
    %c0_i32 = arith.constant 0 : i32
    %c0_i32_0 = arith.constant 0 : i32
    %c0_i32_1 = arith.constant 0 : i32
    %c0_i32_2 = arith.constant 0 : i32
    return %c0_i32, %c0_i32_0, %c0_i32_1 : i32, i32, i32
  }
  func.func @transform_1(%arg0: i32) -> (i32, i32) {
    %c0_i32 = arith.constant 0 : i32
    %c0_i32_0 = arith.constant 0 : i32
    %c0_i32_1 = arith.constant 0 : i32
    return %c0_i32, %c0_i32_0 : i32, i32
  }
  func.func @transform_2(%arg0: i32) -> (i32, i32) {
    %c0_i32 = arith.constant 0 : i32
    %c0_i32_0 = arith.constant 0 : i32
    return %c0_i32, %arg0 : i32, i32
  }
  func.func @transform_3(%arg0: i32) -> (i32, i32) {
    %c0_i32 = arith.constant 0 : i32
    %c0_i32_0 = arith.constant 0 : i32
    return %c0_i32, %arg0 : i32, i32
  }
  func.func @transform_4(%arg0: i32) -> (i32, i32) {
    %c0_i32 = arith.constant 0 : i32
    %c0_i32_0 = arith.constant 0 : i32
    return %c0_i32, %arg0 : i32, i32
  }
}

</mosaic_0001>

<llo_original>
// kernel: linear_head_forward.1
$region0: #{linear_head_forward.1}
  #allocation0 [shape = 'u32[]', space=smem, size = 0x4, offset = 0x4, fixed_abs, tag = 'smem constant byte address 0x4 - core index']
  #allocation1 [shape = 'u32[144,128]{1,0:T(1,128)}', space=vmem, size = 0x12000, scoped, tag = 'internal scratch']
  %s0 = inlined_call_operand.vmem [shape: f32[2,4,256], index: 0, kind: input, shape index: {}]
  %s1 = inlined_call_operand.vmem [shape: bf16[4,256], index: 1, kind: input, shape index: {}]
  %s2 = inlined_call_operand.vmem [shape: bf16[256,128], index: 2, kind: input, shape index: {}]
  %s3 = inlined_call_operand.vmem [shape: f32[1,128], index: 3, kind: input, shape index: {}]
  %s4 = inlined_call_operand.hbm [shape: f32[2,128], index: 4, kind: output, shape index: {}]
  %s5 = sld [smem:[#allocation0]]
  $region26: #{linear_head_forward.1} parent=0
    _
  %s7 = ssub.s32 1, %s5
  %s8 = scalar_select 0, %s7, %s5
  $region1: #{linear_head_forward.1} parent=0
    #allocation2 [shape = 'u8[1024]{0}', space=vmem, size = 0x400, scoped, tag = 'output window, operand 0, single buffered']
    #allocation3 [shape = 's32[1]{0}', space=sflag, size = 0x4, scoped, tag = 'scoped memory for linear_head_forward.1']
    %9 = vsyncpa [#allocation3], 0
    // Predicated region
    $region2: #{linear_head_forward.1} parent=1 // pred_check
      _
    $region3: #{linear_head_forward.1} parent=1 // pred_check_branch
      %11 = sbr.rel (0) target = $region5
    $region4: #{linear_head_forward.1} parent=1 // pred_region
      _
    $region5: #{linear_head_forward.1} parent=1 // pred_fallthru
      _
    // Predicated region
    $region6: #{linear_head_forward.1} parent=1 // pred_check
      _
    $region7: #{linear_head_forward.1} parent=1 // pred_check_branch
      %13 = sbr.rel (0) target = $region9
    $region8: #{linear_head_forward.1} parent=1 // pred_region
      _
    $region9: #{linear_head_forward.1} parent=1 // pred_fallthru
      _
    // Predicated region
    $region10: #{linear_head_forward.1} parent=1 // pred_check
      _
    $region11: #{linear_head_forward.1} parent=1 // pred_check_branch
      %15 = sbr.rel (0) target = $region13
    $region12: #{linear_head_forward.1} parent=1 // pred_region
      _
    $region13: #{linear_head_forward.1} parent=1 // pred_fallthru
      _
    // Predicated region
    $region14: #{linear_head_forward.1} parent=1 // pred_check
      _
    $region15: #{linear_head_forward.1} parent=1 // pred_check_branch
      %17 = sbr.rel (0) target = $region17
    $region16: #{linear_head_forward.1} parent=1 // pred_region
      _
    $region17: #{linear_head_forward.1} parent=1 // pred_fallthru
      _
    %v19 = vld [vmem:[%s0] sm:$0xff]
    %v20 = vld [vmem:[%s0 + $0x8] sm:$0xff]
    %v23 = vcombine.high %v19, %v19
    %v24 = vcombine.high %v20, %v20
    %vm27 = vcmask 1043456
    %v28 = vsel %vm27, %v19, 0.0
    %v29 = vsel %vm27, %v23, 0.0
    %v30 = vadd.f32 %v28, %v29
    %31 = vadd.xlane.f32.xlu0 %v30
    %v32 = vpop.xlane.xlu0 %31
    %v33 = vsel %vm27, %v20, 0.0
    %v34 = vsel %vm27, %v24, 0.0
    %v35 = vadd.f32 %v33, %v34
    %36 = vadd.xlane.f32.xlu0 %v35
    %v37 = vpop.xlane.xlu0 %36
    %v38 = vmul.f32 %v32, 0.00390625
    %v39 = vmul.f32 %v37, 0.00390625
    %v40 = vpack.c.bf16 %v38, %v38
    %v41 = vpack.c.bf16 %v39, %v39
    %v42 = vld [vmem:[%s1] sm:$0xf]
    %v45 = vunpack.c.l.b16 %v40
    %v46 = vunpack.c.l.b16 %v41
    %v47 = vlaneseq
    %v48 = vand.u32 %v47, 127
    %v49 = vlaneseq
    %v50 = vshrl.u32 %v49, 7
    %v51 = vsub.s32 %v48, %v50
    %v52 = vrot.slane %v45, %v51
    %v53 = vlaneseq
    %v54 = vshrl.u32 %v53, 7
    %v55 = vsub.s32 %v48, %v54
    %v56 = vrot.slane %v46, %v55
    %vm57 = vcmask 1041409
    %v58 = vsel %vm57, %v56, %v52
    %v59 = vpack.c.b16 %v58, %v58
    %v62 = vunpack.c.l.s4 1983009808
    %v63 = vunpack.c.0.s8 %v62
    %v64 = vlaneseq
    %v65 = vshrl.u32 %v64, 7
    %v66 = vsub.s32 %v63, %v65
    %v67 = vrot.slane %v42, %v66
    %v68 = vcombine.high %v67, %v67
    %vm69 = vcmask 31744
    %v71 = vsel %vm69, %v59, 0
    %vm73 = vcmask 1041408
    %v75 = vsel %vm73, %v67, 0
    %v78 = vsel %vm73, %v68, 0
    %80 = vmatprep.subr.bf16.mxu0 0
    %81 = vmatpush1.bf16.msra.mxu0 0
    %82 = vmatprep.subr.bf16.mxu0 0
    %83 = vmatpush1.bf16.msra.mxu0 0
    %84 = vmatprep.subr.bf16.mxu0 0
    %85 = vmatpush1.bf16.msra.mxu0 0
    %86 = vmatprep.subr.bf16.mxu0 0
    %87 = vmatpush1.bf16.msra.mxu0 0
    %88 = vmatprep.subr.bf16.mxu0 0
    %89 = vmatpush1.bf16.msra.mxu0 0
    %90 = vmatprep.subr.bf16.mxu0 0
    %91 = vmatpush1.bf16.msra.mxu0 0
    %92 = vmatprep.subr.bf16.mxu0 0
    %93 = vmatpush1.bf16.msra.mxu0 0
    %94 = vmatprep.subr.bf16.mxu0 %v78
    %95 = vmatpush1.bf16.msra.mxu0 %v75
    %96 = vmatprep.subr.bf16.mxu0 0
    %97 = vmatpush2.bf16.msra.mxu0 0
    %98 = vmatprep.subr.bf16.mxu0 0
    %99 = vmatpush2.bf16.msra.mxu0 0
    %100 = vmatprep.subr.bf16.mxu0 0
    %101 = vmatpush2.bf16.msra.mxu0 0
    %102 = vmatprep.subr.bf16.mxu0 0
    %103 = vmatpush2.bf16.msra.mxu0 0
    %104 = vmatprep.subr.bf16.mxu0 0
    %105 = vmatpush2.bf16.msra.mxu0 0
    %106 = vmatprep.subr.bf16.mxu0 0
    %107 = vmatpush2.bf16.msra.mxu0 0
    %108 = vmatprep.subr.bf16.mxu0 0
    %109 = vmatpush2.bf16.msra.mxu0 0
    %110 = vmatprep.subr.bf16.mxu0 0
    %111 = vmatpush2.bf16.msra.mxu0 0
    %112 = vmatprep.mubr.bf16.mxu0 0
    %113 = vmatmul.mubr.bf16.gmra.mxu0 %v71
    %v114 = vpop.f32.mrf.mxu0
    %v115 = vadd.f32 0.0, %v114
    %v116 = vpop.f32.mrf.mxu0
    %v117 = vadd.f32 0.0, %v116
    %v118 = vpop.f32.mrf.mxu0
    %v119 = vpop.f32.mrf.mxu0
    %120 = vdwg.mxu0
    %v121 = vpack.c.bf16 %v115, %v115
    %v122 = vpack.c.bf16 %v117, %v117
    %v123 = vld [vmem:[%s2] sm:$0xf]
    %v124 = vld [vmem:[%s2 + $0x4] sm:$0xf]
    %v125 = vld [vmem:[%s2 + $0x8] sm:$0xf]
    %v126 = vld [vmem:[%s2 + $0xc] sm:$0xf]
    %v127 = vld [vmem:[%s2 + $0x10] sm:$0xf]
    %v128 = vld [vmem:[%s2 + $0x14] sm:$0xf]
    %v129 = vld [vmem:[%s2 + $0x18] sm:$0xf]
    %v130 = vld [vmem:[%s2 + $0x1c] sm:$0xf]
    %v131 = vld [vmem:[%s2 + $0x20] sm:$0xf]
    %v132 = vld [vmem:[%s2 + $0x24] sm:$0xf]
    %v133 = vld [vmem:[%s2 + $0x28] sm:$0xf]
    %v134 = vld [vmem:[%s2 + $0x2c] sm:$0xf]
    %v135 = vld [vmem:[%s2 + $0x30] sm:$0xf]
    %v136 = vld [vmem:[%s2 + $0x34] sm:$0xf]
    %v137 = vld [vmem:[%s2 + $0x38] sm:$0xf]
    %v138 = vld [vmem:[%s2 + $0x3c] sm:$0xf]
    %v139 = vld [vmem:[%s2 + $0x40] sm:$0xf]
    %v140 = vld [vmem:[%s2 + $0x44] sm:$0xf]
    %v141 = vld [vmem:[%s2 + $0x48] sm:$0xf]
    %v142 = vld [vmem:[%s2 + $0x4c] sm:$0xf]
    %v143 = vld [vmem:[%s2 + $0x50] sm:$0xf]
    %v144 = vld [vmem:[%s2 + $0x54] sm:$0xf]
    %v145 = vld [vmem:[%s2 + $0x58] sm:$0xf]
    %v146 = vld [vmem:[%s2 + $0x5c] sm:$0xf]
    %v147 = vld [vmem:[%s2 + $0x60] sm:$0xf]
    %v148 = vld [vmem:[%s2 + $0x64] sm:$0xf]
    %v149 = vld [vmem:[%s2 + $0x68] sm:$0xf]
    %v150 = vld [vmem:[%s2 + $0x6c] sm:$0xf]
    %v151 = vld [vmem:[%s2 + $0x70] sm:$0xf]
    %v152 = vld [vmem:[%s2 + $0x74] sm:$0xf]
    %v153 = vld [vmem:[%s2 + $0x78] sm:$0xf]
    %v154 = vld [vmem:[%s2 + $0x7c] sm:$0xf]
    %v155 = vld [vmem:[%s3] sm:$0x1]
    %v157 = vlaneseq
    %v158 = vshrl.u32 %v157, 7
    %v159 = vsub.s32 0, %v158
    %v160 = vrot.slane %v155, %v159
    %v194 = vunpack.c.l.b16 %v123
    %v195 = vunpack.c.l.b16 %v124
    %v196 = vunpack.c.l.b16 %v125
    %v197 = vunpack.c.l.b16 %v126
    %v198 = vunpack.c.l.b16 %v127
    %v199 = vunpack.c.l.b16 %v128
    %v200 = vunpack.c.l.b16 %v129
    %v201 = vunpack.c.l.b16 %v130
    %v202 = vunpack.c.l.b16 %v131
    %v203 = vunpack.c.l.b16 %v132
    %v204 = vunpack.c.l.b16 %v133
    %v205 = vunpack.c.l.b16 %v134
    %v206 = vunpack.c.l.b16 %v135
    %v207 = vunpack.c.l.b16 %v136
    %v208 = vunpack.c.l.b16 %v137
    %v209 = vunpack.c.l.b16 %v138
    %v210 = vunpack.c.l.b16 %v139
    %v211 = vunpack.c.l.b16 %v140
    %v212 = vunpack.c.l.b16 %v141
    %v213 = vunpack.c.l.b16 %v142
    %v214 = vunpack.c.l.b16 %v143
    %v215 = vunpack.c.l.b16 %v144
    %v216 = vunpack.c.l.b16 %v145
    %v217 = vunpack.c.l.b16 %v146
    %v218 = vunpack.c.l.b16 %v147
    %v219 = vunpack.c.l.b16 %v148
    %v220 = vunpack.c.l.b16 %v149
    %v221 = vunpack.c.l.b16 %v150
    %v222 = vunpack.c.l.b16 %v151
    %v223 = vunpack.c.l.b16 %v152
    %v224 = vunpack.c.l.b16 %v153
    %v225 = vunpack.c.l.b16 %v154
    %v226 = vpack.c.b16 %v195, %v194
    %v227 = vpack.c.b16 %v197, %v196
    %v228 = vpack.c.b16 %v199, %v198
    %v229 = vpack.c.b16 %v201, %v200
    %v230 = vpack.c.b16 %v203, %v202
    %v231 = vpack.c.b16 %v205, %v204
    %v232 = vpack.c.b16 %v207, %v206
    %v233 = vpack.c.b16 %v209, %v208
    %v234 = vpack.c.b16 %v211, %v210
    %v235 = vpack.c.b16 %v213, %v212
    %v236 = vpack.c.b16 %v215, %v214
    %v237 = vpack.c.b16 %v217, %v216
    %v238 = vpack.c.b16 %v219, %v218
    %v239 = vpack.c.b16 %v221, %v220
    %v240 = vpack.c.b16 %v223, %v222
    %v241 = vpack.c.b16 %v225, %v224
    %258 = vmatprep.subr.bf16.mxu0 0
    %259 = vmatpush1.bf16.msra.mxu0 %v233
    %260 = vmatprep.subr.bf16.mxu0 0
    %261 = vmatpush1.bf16.msra.mxu0 %v232
    %262 = vmatprep.subr.bf16.mxu0 0
    %263 = vmatpush1.bf16.msra.mxu0 %v231
    %264 = vmatprep.subr.bf16.mxu0 0
    %265 = vmatpush1.bf16.msra.mxu0 %v230
    %266 = vmatprep.subr.bf16.mxu0 0
    %267 = vmatpush1.bf16.msra.mxu0 %v229
    %268 = vmatprep.subr.bf16.mxu0 0
    %269 = vmatpush1.bf16.msra.mxu0 %v228
    %270 = vmatprep.subr.bf16.mxu0 0
    %271 = vmatpush1.bf16.msra.mxu0 %v227
    %272 = vmatprep.subr.bf16.mxu0 0
    %273 = vmatpush1.bf16.msra.mxu0 %v226
    %274 = vmatprep.subr.bf16.mxu0 0
    %275 = vmatpush2.bf16.msra.mxu0 %v241
    %276 = vmatprep.subr.bf16.mxu0 0
    %277 = vmatpush2.bf16.msra.mxu0 %v240
    %278 = vmatprep.subr.bf16.mxu0 0
    %279 = vmatpush2.bf16.msra.mxu0 %v239
    %280 = vmatprep.subr.bf16.mxu0 0
    %281 = vmatpush2.bf16.msra.mxu0 %v238
    %282 = vmatprep.subr.bf16.mxu0 0
    %283 = vmatpush2.bf16.msra.mxu0 %v237
    %284 = vmatprep.subr.bf16.mxu0 0
    %285 = vmatpush2.bf16.msra.mxu0 %v236
    %286 = vmatprep.subr.bf16.mxu0 0
    %287 = vmatpush2.bf16.msra.mxu0 %v235
    %288 = vmatprep.subr.bf16.mxu0 0
    %289 = vmatpush2.bf16.msra.mxu0 %v234
    %290 = vmatprep.mubr.bf16.mxu0 %v122
    %291 = vmatmul.mubr.bf16.gmra.mxu0 %v121
    %v292 = vpop.f32.mrf.mxu0
    %v293 = vadd.f32 %v160, %v292
    %v294 = vpop.f32.mrf.mxu0
    %v295 = vpop.f32.mrf.mxu0
    %v296 = vpop.f32.mrf.mxu0
    %297 = vdwg.mxu0
    %298 = vst [vmem:[#allocation2] sm:$0x3] %v293
    // Predicated region
    $region18: #{linear_head_forward.1} parent=1 // pred_check
      _
    $region19: #{linear_head_forward.1} parent=1 // pred_check_branch
      %300 = sbr.rel (0) target = $region21
    $region20: #{linear_head_forward.1} parent=1 // pred_region
      %s302 = ssub.s32 32, 32
      %303 = vsyncadd [#allocation3], %s302
      %s305 = sshll.u32 [#allocation2], 4
      %s306 = int_to_ptr.vmem [resolvable:$true] %s305
      %308 = dma.vmem_to_hbm [thread:$0]  %s306, 32, %s4, [#allocation3]
    $region21: #{linear_head_forward.1} parent=1 // pred_fallthru
      _
    // Predicated region
    $region22: #{linear_head_forward.1} parent=1 // pred_check
      _
    $region23: #{linear_head_forward.1} parent=1 // pred_check_branch
      %310 = sbr.rel (0) target = $region25
    $region24: #{linear_head_forward.1} parent=1 // pred_region
      %311 = dma.done [#allocation3], 32
    $region25: #{linear_head_forward.1} parent=1 // pred_fallthru
      _
    %312 = vsyncpa [#allocation3], 1

</llo_original>
